<compile_context>
chip_gen: v5e
topology: v5e:2x2
jax: 0.10.0
libtpu: 0.0.40
codegen_flags: <defaults>
</compile_context>

<pallas_src>
import functools

import jax
import jax.numpy as jnp
from jax.experimental import pallas as pl
from jax.experimental.pallas import tpu as pltpu


def _rb_kernel(slab_ref, w_ref, sgewb_ref, out_ref, *, C, H, W, groups):
    f32 = jnp.float32
    bf16 = jnp.bfloat16
    HW = H * W

    slab = slab_ref[0]                        # (9C, HW) bf16 im2col taps
    w = w_ref[...]                            # (C, 17C) bf16 fused weight slab

    wb2  = w[:, 0:9 * C]                      # dilated-3x3 taps, (C, 9C)
    wb1  = w[:, 9 * C:10 * C]                 # ASPP 1x1 branch
    wb3  = w[:, 10 * C:11 * C].astype(f32)    # ASPP pooled branch (tiny, f32)
    wp12 = w[:, 11 * C:13 * C]                # projection over [b1; b2]
    wp3  = w[:, 13 * C:14 * C].astype(f32)    # projection of pooled branch
    wpa  = w[:, 14 * C:15 * C]                # pixel-attention 1x1
    wc   = w[:, 15 * C:17 * C]                # final 1x1 over [pa; sge]

    xc = slab[4 * C:5 * C, :]                 # center tap == original x (bf16)

    # ---------------- ASPP ----------------
    # branch 1: 1x1 conv + ReLU ; branch 2: dilated 3x3 as ONE 9C-deep matmul
    b1 = jnp.maximum(jnp.dot(wb1, xc, preferred_element_type=f32), 0.0)
    b2 = jnp.maximum(jnp.dot(wb2, slab, preferred_element_type=f32), 0.0)

    # branch 3: global average pool -> 1x1 -> ReLU (constant over HW)
    gap = jnp.mean(xc.astype(f32), axis=1, keepdims=True)            # (C, 1)
    b3 = jnp.maximum(jnp.dot(wb3, gap, preferred_element_type=f32), 0.0)

    # fused 1x1 projection of concat([b1, b2, b3]); b3 term broadcasts over HW
    b12 = jnp.concatenate([b1, b2], axis=0).astype(bf16)             # (2C, HW)
    res = (jnp.dot(wp12, b12, preferred_element_type=f32)
           + jnp.dot(wp3, b3, preferred_element_type=f32))           # (C, HW)

    # ---------------- Pixel attention ----------------
    att = jax.nn.sigmoid(
        jnp.dot(wpa, res.astype(bf16), preferred_element_type=f32))
    pa = att * res                                                   # f32

    # ---------------- SGE (statistics kept in f32) ----------------
    cg = C // groups
    sge_parts = []
    for g in range(groups):
        xg = res[g * cg:(g + 1) * cg, :]                             # (cg, HW)
        pooled = jnp.mean(xg, axis=1, keepdims=True)                 # (cg, 1)
        t = jnp.sum(xg * pooled, axis=0, keepdims=True)              # (1, HW)
        tc = t - jnp.mean(t)
        var = jnp.sum(tc * tc) / (HW - 1)            # unbiased (torch .std)
        tn = tc / (jnp.sqrt(var) + 1e-5)
        tn = tn * sgewb_ref[0, g] + sgewb_ref[1, g]
        sge_parts.append(xg * jax.nn.sigmoid(tn))
    sge = jnp.concatenate(sge_parts, axis=0)                         # (C, HW)

    # ---------------- fused final 1x1 conv: cat([pa, sge]) -> C ----------------
    rhs = jnp.concatenate([pa, sge], axis=0).astype(bf16)            # (2C, HW)
    out_ref[0] = jnp.dot(wc, rhs, preferred_element_type=f32).astype(out_ref.dtype)


def rb_forward(x, params, *, groups=2):
    B, C, H, W = x.shape
    HW = H * W
    bf16 = jnp.bfloat16

    # wrapper-side im2col of the dilated (rate=3, pad=3) 3x3 taps -> bf16 slab
    # (B, 9C, HW).  Tap t = 3*ky + kx lives in rows [t*C, (t+1)*C); tap 4 is x.
    xpad = jnp.pad(x.astype(bf16), ((0, 0), (0, 0), (3, 3), (3, 3)))
    taps = [xpad[:, :, 3 * ky:3 * ky + H, 3 * kx:3 * kx + W]
            for ky in range(3) for kx in range(3)]
    slab = jnp.concatenate(taps, axis=1).reshape(B, 9 * C, HW)

    # pack every 1x1 / tap weight into one (C, 17C) bf16 slab (single DMA).
    wb2flat = params['wb2'].transpose(1, 0, 2).reshape(C, 9 * C)
    wcat = jnp.concatenate(
        [wb2flat, params['wb1'], params['wb3'],
         params['wp1'], params['wp2'], params['wp3'],
         params['wpa'], params['wc_pa'], params['wc_sge']],
        axis=1).astype(bf16)
    sge_wb = jnp.concatenate([params['sge_w'], params['sge_b']],
                             axis=0).astype(jnp.float32)             # (2, groups)

    kernel = functools.partial(_rb_kernel, C=C, H=H, W=W, groups=groups)

    out = pl.pallas_call(
        kernel,
        out_shape=jax.ShapeDtypeStruct((B, C, HW), jnp.float32),
        grid=(B,),
        in_specs=[
            pl.BlockSpec((1, 9 * C, HW), lambda b: (b, 0, 0)),       # im2col slab
            pl.BlockSpec((C, 17 * C), lambda b: (0, 0)),             # weight slab
            pl.BlockSpec(memory_space=pltpu.MemorySpace.SMEM),       # sge w/b
        ],
        out_specs=pl.BlockSpec((1, C, HW), lambda b: (b, 0, 0)),
        compiler_params=pltpu.CompilerParams(
            dimension_semantics=("parallel",),
            vmem_limit_bytes=32 * 1024 * 1024),
    )(slab, wcat, sge_wb)
    return out.reshape(B, C, H, W)


def rb_reference(x, p, *, groups=2):
    """Pure-JAX reference with the same bf16-matmul / f32-stats policy."""
    B, C, H, W = x.shape
    HW = H * W
    f32, bf16 = jnp.float32, jnp.bfloat16
    q = lambda a: a.astype(bf16).astype(f32)      # mirror kernel's bf16 casts
    mm = lambda w, v: jnp.einsum('oc,bcs->bos', w, v)

    xq = q(x)
    xpad = jnp.pad(xq, ((0, 0), (0, 0), (3, 3), (3, 3)))
    xf = xq.reshape(B, C, HW)

    b1 = jax.nn.relu(mm(q(p['wb1']), xf))
    acc = jnp.zeros((B, C, HW), f32)
    for ky in range(3):
        for kx in range(3):
            sh = xpad[:, :, 3 * ky:3 * ky + H, 3 * kx:3 * kx + W].reshape(B, C, HW)
            acc = acc + mm(q(p['wb2'][3 * ky + kx]), sh)
    b2 = jax.nn.relu(acc)
    gap = jnp.mean(xf, axis=2, keepdims=True)
    b3 = jax.nn.relu(mm(q(p['wb3']), gap))
    res = mm(q(p['wp1']), q(b1)) + mm(q(p['wp2']), q(b2)) + mm(q(p['wp3']), b3)

    pa = jax.nn.sigmoid(mm(q(p['wpa']), q(res))) * res

    cg = C // groups
    sge_parts = []
    for g in range(groups):
        xg = res[:, g * cg:(g + 1) * cg, :]
        pooled = jnp.mean(xg, axis=2, keepdims=True)
        t = jnp.sum(xg * pooled, axis=1, keepdims=True)
        tc = t - jnp.mean(t, axis=2, keepdims=True)
        var = jnp.sum(tc * tc, axis=2, keepdims=True) / (HW - 1)
        tn = tc / (jnp.sqrt(var) + 1e-5)
        tn = tn * p['sge_w'][0, g] + p['sge_b'][0, g]
        sge_parts.append(xg * jax.nn.sigmoid(tn))
    sge = jnp.concatenate(sge_parts, axis=1)

    out = mm(q(p['wc_pa']), q(pa)) + mm(q(p['wc_sge']), q(sge))
    return out.reshape(B, C, H, W)


if __name__ == "__main__":
    B, C, H, W = 2, 4, 16, 16
    groups = 2

    key = jax.random.PRNGKey(0)
    keys = jax.random.split(key, 12)
    init = lambda k, shape: (0.1 * jax.random.normal(k, shape)).astype(jnp.float32)
    params = {
        'wb1':    init(keys[0], (C, C)),
        'wb2':    init(keys[1], (9, C, C)),
        'wb3':    init(keys[2], (C, C)),
        'wp1':    init(keys[3], (C, C)),
        'wp2':    init(keys[4], (C, C)),
        'wp3':    init(keys[5], (C, C)),
        'wpa':    init(keys[6], (C, C)),
        'wc_pa':  init(keys[7], (C, C)),
        'wc_sge': init(keys[8], (C, C)),
        'sge_w':  init(keys[9], (1, groups)),
        'sge_b':  jnp.ones((1, groups), jnp.float32),
    }
    x = jax.random.normal(keys[10], (B, C, H, W), dtype=jnp.float32)

    out = rb_forward(x, params, groups=groups)
    jax.block_until_ready(out)

    ref = rb_reference(x, params, groups=groups)
    assert out.shape == (B, C, H, W)
    err = float(jnp.max(jnp.abs(out - ref)))
    assert jnp.allclose(out, ref, atol=5e-3, rtol=5e-3), err
    print("KERNEL_OK")
</pallas_src>

<mosaic_0001>
module attributes {stable_mosaic.version = 11 : i64} {
  func.func @_rb_kernel(%arg0: i32, %arg1: memref<1x36x256xbf16, #tpu.memory_space<vmem>>, %arg2: memref<4x68xbf16, #tpu.memory_space<vmem>>, %arg3: memref<2x2xf32, #tpu.memory_space<smem>>, %arg4: memref<1x4x256xf32, #tpu.memory_space<vmem>>) attributes {dimension_semantics = [#tpu.dimension_semantics<parallel>], iteration_bounds = array<i64: 2>, scalar_prefetch = 0 : i64, scratch_operands = 0 : i64, tpu.core_type = #tpu.core_type<tc>, window_params = [{transform_indices = @transform_0, window_bounds = array<i64: 1, 36, 256>}, {pipeline_mode = #tpu.pipeline_mode<synchronous>, transform_indices = @transform_1, window_bounds = array<i64: 4, 68>}, {transform_indices = @transform_2, window_bounds = array<i64: 2, 2>}, {transform_indices = @transform_3, window_bounds = array<i64: 1, 4, 256>}]} {
    %c0 = arith.constant 0 : index
    %c0_0 = arith.constant 0 : index
    %c0_1 = arith.constant 0 : index
    %0 = vector.load %arg1[%c0, %c0_0, %c0_1] : memref<1x36x256xbf16, #tpu.memory_space<vmem>>, vector<1x36x256xbf16>
    %1 = vector.shape_cast %0 : vector<1x36x256xbf16> to vector<36x256xbf16>
    %c0_2 = arith.constant 0 : index
    %c0_3 = arith.constant 0 : index
    %2 = vector.load %arg2[%c0_2, %c0_3] : memref<4x68xbf16, #tpu.memory_space<vmem>>, vector<4x68xbf16>
    %3 = vector.extract_strided_slice %2 {offsets = [0, 0], sizes = [4, 36], strides = [1, 1]} : vector<4x68xbf16> to vector<4x36xbf16>
    %4 = vector.extract_strided_slice %2 {offsets = [0, 36], sizes = [4, 4], strides = [1, 1]} : vector<4x68xbf16> to vector<4x4xbf16>
    %5 = vector.extract_strided_slice %2 {offsets = [0, 40], sizes = [4, 4], strides = [1, 1]} : vector<4x68xbf16> to vector<4x4xbf16>
    %6 = arith.extf %5 : vector<4x4xbf16> to vector<4x4xf32>
    %7 = vector.extract_strided_slice %2 {offsets = [0, 44], sizes = [4, 8], strides = [1, 1]} : vector<4x68xbf16> to vector<4x8xbf16>
    %8 = vector.extract_strided_slice %2 {offsets = [0, 52], sizes = [4, 4], strides = [1, 1]} : vector<4x68xbf16> to vector<4x4xbf16>
    %9 = arith.extf %8 : vector<4x4xbf16> to vector<4x4xf32>
    %10 = vector.extract_strided_slice %2 {offsets = [0, 56], sizes = [4, 4], strides = [1, 1]} : vector<4x68xbf16> to vector<4x4xbf16>
    %11 = vector.extract_strided_slice %2 {offsets = [0, 60], sizes = [4, 8], strides = [1, 1]} : vector<4x68xbf16> to vector<4x8xbf16>
    %12 = vector.extract_strided_slice %1 {offsets = [16, 0], sizes = [4, 256], strides = [1, 1]} : vector<36x256xbf16> to vector<4x256xbf16>
    %cst = arith.constant dense<0.000000e+00> : vector<4x256xf32>
    %13 = tpu.matmul %4, %12, %cst {dimension_numbers = #tpu.dot_dimension_numbers<[1], [0], [0], [1], [0, 0, 1, 1], [], []>} : vector<4x4xbf16>, vector<4x256xbf16>, vector<4x256xf32> -> vector<4x256xf32>
    %cst_4 = arith.constant 0.000000e+00 : f32
    %14 = vector.broadcast %cst_4 : f32 to vector<4x256xf32>
    %15 = arith.maximumf %13, %14 : vector<4x256xf32>
    %cst_5 = arith.constant dense<0.000000e+00> : vector<4x256xf32>
    %16 = tpu.matmul %3, %1, %cst_5 {dimension_numbers = #tpu.dot_dimension_numbers<[1], [0], [0], [1], [0, 0, 1, 1], [], []>} : vector<4x36xbf16>, vector<36x256xbf16>, vector<4x256xf32> -> vector<4x256xf32>
    %cst_6 = arith.constant 0.000000e+00 : f32
    %17 = vector.broadcast %cst_6 : f32 to vector<4x256xf32>
    %18 = arith.maximumf %16, %17 : vector<4x256xf32>
    %19 = arith.extf %12 : vector<4x256xbf16> to vector<4x256xf32>
    %cst_7 = arith.constant dense<0.000000e+00> : vector<4xf32>
    %20 = vector.multi_reduction <add>, %19, %cst_7 [1] : vector<4x256xf32> to vector<4xf32>
    %21 = vector.shape_cast %20 : vector<4xf32> to vector<4x1xf32>
    %cst_8 = arith.constant 2.560000e+02 : f32
    %22 = vector.broadcast %cst_8 : f32 to vector<4x1xf32>
    %23 = arith.divf %21, %22 : vector<4x1xf32>
    %cst_9 = arith.constant dense<0.000000e+00> : vector<4x1xf32>
    %24 = tpu.matmul %6, %23, %cst_9 {dimension_numbers = #tpu.dot_dimension_numbers<[1], [0], [0], [1], [0, 0, 1, 1], [], []>} : vector<4x4xf32>, vector<4x1xf32>, vector<4x1xf32> -> vector<4x1xf32>
    %cst_10 = arith.constant 0.000000e+00 : f32
    %25 = vector.broadcast %cst_10 : f32 to vector<4x1xf32>
    %26 = arith.maximumf %24, %25 : vector<4x1xf32>
    %27 = tpu.concatenate %15, %18 in 0 : vector<4x256xf32>, vector<4x256xf32> -> vector<8x256xf32>
    %28 = arith.truncf %27 : vector<8x256xf32> to vector<8x256xbf16>
    %cst_11 = arith.constant dense<0.000000e+00> : vector<4x256xf32>
    %29 = tpu.matmul %7, %28, %cst_11 {dimension_numbers = #tpu.dot_dimension_numbers<[1], [0], [0], [1], [0, 0, 1, 1], [], []>} : vector<4x8xbf16>, vector<8x256xbf16>, vector<4x256xf32> -> vector<4x256xf32>
    %cst_12 = arith.constant dense<0.000000e+00> : vector<4x1xf32>
    %30 = tpu.matmul %9, %26, %cst_12 {dimension_numbers = #tpu.dot_dimension_numbers<[1], [0], [0], [1], [0, 0, 1, 1], [], []>} : vector<4x4xf32>, vector<4x1xf32>, vector<4x1xf32> -> vector<4x1xf32>
    %31 = vector.broadcast %30 : vector<4x1xf32> to vector<4x256xf32>
    %32 = arith.addf %29, %31 : vector<4x256xf32>
    %33 = arith.truncf %32 : vector<4x256xf32> to vector<4x256xbf16>
    %cst_13 = arith.constant dense<0.000000e+00> : vector<4x256xf32>
    %34 = tpu.matmul %10, %33, %cst_13 {dimension_numbers = #tpu.dot_dimension_numbers<[1], [0], [0], [1], [0, 0, 1, 1], [], []>} : vector<4x4xbf16>, vector<4x256xbf16>, vector<4x256xf32> -> vector<4x256xf32>
    %35 = arith.negf %34 : vector<4x256xf32>
    %36 = math.exp %35 : vector<4x256xf32>
    %cst_14 = arith.constant 1.000000e+00 : f32
    %37 = vector.broadcast %cst_14 : f32 to vector<4x256xf32>
    %38 = arith.addf %37, %36 : vector<4x256xf32>
    %39 = arith.divf %37, %38 : vector<4x256xf32>
    %40 = arith.mulf %39, %32 : vector<4x256xf32>
    %41 = vector.extract_strided_slice %32 {offsets = [0, 0], sizes = [2, 256], strides = [1, 1]} : vector<4x256xf32> to vector<2x256xf32>
    %cst_15 = arith.constant dense<0.000000e+00> : vector<2xf32>
    %42 = vector.multi_reduction <add>, %41, %cst_15 [1] : vector<2x256xf32> to vector<2xf32>
    %43 = vector.shape_cast %42 : vector<2xf32> to vector<2x1xf32>
    %cst_16 = arith.constant 2.560000e+02 : f32
    %44 = vector.broadcast %cst_16 : f32 to vector<2x1xf32>
    %45 = arith.divf %43, %44 : vector<2x1xf32>
    %46 = vector.broadcast %45 : vector<2x1xf32> to vector<2x256xf32>
    %47 = arith.mulf %41, %46 : vector<2x256xf32>
    %cst_17 = arith.constant dense<0.000000e+00> : vector<256xf32>
    %48 = vector.multi_reduction <add>, %47, %cst_17 [0] : vector<2x256xf32> to vector<256xf32>
    %49 = vector.shape_cast %48 : vector<256xf32> to vector<1x256xf32>
    %50 = vector.shape_cast %49 : vector<1x256xf32> to vector<1x1x256xf32>
    %cst_18 = arith.constant dense<0.000000e+00> : vector<1xf32>
    %51 = vector.multi_reduction <add>, %50, %cst_18 [1, 2] : vector<1x1x256xf32> to vector<1xf32>
    %52 = vector.shape_cast %51 : vector<1xf32> to vector<1x1x1xf32>
    %53 = vector.extract %52[0, 0, 0] : f32 from vector<1x1x1xf32>
    %cst_19 = arith.constant 2.560000e+02 : f32
    %54 = arith.divf %53, %cst_19 : f32
    %55 = vector.broadcast %54 : f32 to vector<1x256xf32>
    %56 = arith.subf %49, %55 : vector<1x256xf32>
    %57 = arith.mulf %56, %56 : vector<1x256xf32>
    %58 = vector.shape_cast %57 : vector<1x256xf32> to vector<1x1x256xf32>
    %cst_20 = arith.constant dense<0.000000e+00> : vector<1xf32>
    %59 = vector.multi_reduction <add>, %58, %cst_20 [1, 2] : vector<1x1x256xf32> to vector<1xf32>
    %60 = vector.shape_cast %59 : vector<1xf32> to vector<1x1x1xf32>
    %61 = vector.extract %60[0, 0, 0] : f32 from vector<1x1x1xf32>
    %cst_21 = arith.constant 2.550000e+02 : f32
    %62 = arith.divf %61, %cst_21 : f32
    %63 = math.sqrt %62 : f32
    %cst_22 = arith.constant 9.99999974E-6 : f32
    %64 = arith.addf %63, %cst_22 : f32
    %65 = vector.broadcast %64 : f32 to vector<1x256xf32>
    %66 = arith.divf %56, %65 : vector<1x256xf32>
    %c0_23 = arith.constant 0 : index
    %c0_24 = arith.constant 0 : index
    %67 = memref.load %arg3[%c0_23, %c0_24] : memref<2x2xf32, #tpu.memory_space<smem>>
    %68 = vector.broadcast %67 : f32 to vector<1x256xf32>
    %69 = arith.mulf %66, %68 : vector<1x256xf32>
    %c1 = arith.constant 1 : index
    %c0_25 = arith.constant 0 : index
    %70 = memref.load %arg3[%c1, %c0_25] : memref<2x2xf32, #tpu.memory_space<smem>>
    %71 = vector.broadcast %70 : f32 to vector<1x256xf32>
    %72 = arith.addf %69, %71 : vector<1x256xf32>
    %73 = arith.negf %72 : vector<1x256xf32>
    %74 = math.exp %73 : vector<1x256xf32>
    %cst_26 = arith.constant 1.000000e+00 : f32
    %75 = vector.broadcast %cst_26 : f32 to vector<1x256xf32>
    %76 = arith.addf %75, %74 : vector<1x256xf32>
    %77 = arith.divf %75, %76 : vector<1x256xf32>
    %78 = vector.broadcast %77 : vector<1x256xf32> to vector<2x256xf32>
    %79 = arith.mulf %41, %78 : vector<2x256xf32>
    %80 = vector.extract_strided_slice %32 {offsets = [2, 0], sizes = [2, 256], strides = [1, 1]} : vector<4x256xf32> to vector<2x256xf32>
    %cst_27 = arith.constant dense<0.000000e+00> : vector<2xf32>
    %81 = vector.multi_reduction <add>, %80, %cst_27 [1] : vector<2x256xf32> to vector<2xf32>
    %82 = vector.shape_cast %81 : vector<2xf32> to vector<2x1xf32>
    %cst_28 = arith.constant 2.560000e+02 : f32
    %83 = vector.broadcast %cst_28 : f32 to vector<2x1xf32>
    %84 = arith.divf %82, %83 : vector<2x1xf32>
    %85 = vector.broadcast %84 : vector<2x1xf32> to vector<2x256xf32>
    %86 = arith.mulf %80, %85 : vector<2x256xf32>
    %cst_29 = arith.constant dense<0.000000e+00> : vector<256xf32>
    %87 = vector.multi_reduction <add>, %86, %cst_29 [0] : vector<2x256xf32> to vector<256xf32>
    %88 = vector.shape_cast %87 : vector<256xf32> to vector<1x256xf32>
    %89 = vector.shape_cast %88 : vector<1x256xf32> to vector<1x1x256xf32>
    %cst_30 = arith.constant dense<0.000000e+00> : vector<1xf32>
    %90 = vector.multi_reduction <add>, %89, %cst_30 [1, 2] : vector<1x1x256xf32> to vector<1xf32>
    %91 = vector.shape_cast %90 : vector<1xf32> to vector<1x1x1xf32>
    %92 = vector.extract %91[0, 0, 0] : f32 from vector<1x1x1xf32>
    %cst_31 = arith.constant 2.560000e+02 : f32
    %93 = arith.divf %92, %cst_31 : f32
    %94 = vector.broadcast %93 : f32 to vector<1x256xf32>
    %95 = arith.subf %88, %94 : vector<1x256xf32>
    %96 = arith.mulf %95, %95 : vector<1x256xf32>
    %97 = vector.shape_cast %96 : vector<1x256xf32> to vector<1x1x256xf32>
    %cst_32 = arith.constant dense<0.000000e+00> : vector<1xf32>
    %98 = vector.multi_reduction <add>, %97, %cst_32 [1, 2] : vector<1x1x256xf32> to vector<1xf32>
    %99 = vector.shape_cast %98 : vector<1xf32> to vector<1x1x1xf32>
    %100 = vector.extract %99[0, 0, 0] : f32 from vector<1x1x1xf32>
    %cst_33 = arith.constant 2.550000e+02 : f32
    %101 = arith.divf %100, %cst_33 : f32
    %102 = math.sqrt %101 : f32
    %cst_34 = arith.constant 9.99999974E-6 : f32
    %103 = arith.addf %102, %cst_34 : f32
    %104 = vector.broadcast %103 : f32 to vector<1x256xf32>
    %105 = arith.divf %95, %104 : vector<1x256xf32>
    %c0_35 = arith.constant 0 : index
    %c1_36 = arith.constant 1 : index
    %106 = memref.load %arg3[%c0_35, %c1_36] : memref<2x2xf32, #tpu.memory_space<smem>>
    %107 = vector.broadcast %106 : f32 to vector<1x256xf32>
    %108 = arith.mulf %105, %107 : vector<1x256xf32>
    %c1_37 = arith.constant 1 : index
    %c1_38 = arith.constant 1 : index
    %109 = memref.load %arg3[%c1_37, %c1_38] : memref<2x2xf32, #tpu.memory_space<smem>>
    %110 = vector.broadcast %109 : f32 to vector<1x256xf32>
    %111 = arith.addf %108, %110 : vector<1x256xf32>
    %112 = arith.negf %111 : vector<1x256xf32>
    %113 = math.exp %112 : vector<1x256xf32>
    %cst_39 = arith.constant 1.000000e+00 : f32
    %114 = vector.broadcast %cst_39 : f32 to vector<1x256xf32>
    %115 = arith.addf %114, %113 : vector<1x256xf32>
    %116 = arith.divf %114, %115 : vector<1x256xf32>
    %117 = vector.broadcast %116 : vector<1x256xf32> to vector<2x256xf32>
    %118 = arith.mulf %80, %117 : vector<2x256xf32>
    %119 = tpu.concatenate %79, %118 in 0 : vector<2x256xf32>, vector<2x256xf32> -> vector<4x256xf32>
    %120 = tpu.concatenate %40, %119 in 0 : vector<4x256xf32>, vector<4x256xf32> -> vector<8x256xf32>
    %121 = arith.truncf %120 : vector<8x256xf32> to vector<8x256xbf16>
    %cst_40 = arith.constant dense<0.000000e+00> : vector<4x256xf32>
    %122 = tpu.matmul %11, %121, %cst_40 {dimension_numbers = #tpu.dot_dimension_numbers<[1], [0], [0], [1], [0, 0, 1, 1], [], []>} : vector<4x8xbf16>, vector<8x256xbf16>, vector<4x256xf32> -> vector<4x256xf32>
    %c0_41 = arith.constant 0 : index
    %c0_42 = arith.constant 0 : index
    %c0_43 = arith.constant 0 : index
    %123 = vector.load %arg4[%c0_41, %c0_42, %c0_43] : memref<1x4x256xf32, #tpu.memory_space<vmem>>, vector<1x4x256xf32>
    %124 = vector.shape_cast %123 : vector<1x4x256xf32> to vector<4x256xf32>
    %125 = vector.shape_cast %122 : vector<4x256xf32> to vector<1x4x256xf32>
    tpu.vector_store %arg4[%c0_41, %c0_42, %c0_43], %125 {strides = array<i32>} : memref<1x4x256xf32, #tpu.memory_space<vmem>>, vector<1x4x256xf32>,
    return
  }
  func.func @transform_0(%arg0: i32) -> (i32, i32, i32) {
    %c0_i32 = arith.constant 0 : i32
    %c0_i32_0 = arith.constant 0 : i32
    %c0_i32_1 = arith.constant 0 : i32
    return %arg0, %c0_i32, %c0_i32_0 : i32, i32, i32
  }
  func.func @transform_1(%arg0: i32) -> (i32, i32) {
    %c0_i32 = arith.constant 0 : i32
    %c0_i32_0 = arith.constant 0 : i32
    %c0_i32_1 = arith.constant 0 : i32
    return %c0_i32, %c0_i32_0 : i32, i32
  }
  func.func @transform_2(%arg0: i32) -> (i32, i32) {
    %c0_i32 = arith.constant 0 : i32
    %c0_i32_0 = arith.constant 0 : i32
    %c0_i32_1 = arith.constant 0 : i32
    return %c0_i32, %c0_i32_0 : i32, i32
  }
  func.func @transform_3(%arg0: i32) -> (i32, i32, i32) {
    %c0_i32 = arith.constant 0 : i32
    %c0_i32_0 = arith.constant 0 : i32
    %c0_i32_1 = arith.constant 0 : i32
    return %arg0, %c0_i32, %c0_i32_0 : i32, i32, i32
  }
}

</mosaic_0001>

<llo_original>
// kernel: tpu_custom_call.1
$region0: #{tpu_custom_call.1}
  #allocation0 [shape = 'u32[]', space=smem, size = 0x4, offset = 0x4, fixed_abs, tag = 'smem constant byte address 0x4 - core index']
  #allocation1 [shape = 'u32[72,128]{1,0:T(1,128)}', space=vmem, size = 0x9000, scoped, tag = 'internal scratch']
  %s0 = inlined_call_operand.vmem [shape: bf16[2,36,256], index: 0, kind: input, shape index: {}]
  %s1 = inlined_call_operand.vmem [shape: bf16[4,68], index: 1, kind: input, shape index: {}]
  %s2 = inlined_call_operand.vmem [shape: f32[2,2], index: 2, kind: input, shape index: {}]
  %s3 = inlined_call_operand.hbm [shape: f32[2,4,256], index: 3, kind: output, shape index: {}]
  %s4 = sld [smem:[#allocation0]]
  $region49: #{tpu_custom_call.1} parent=0
    _
  %s6 = ssub.s32 1, %s4
  %s7 = scalar_select 0, %s6, %s4
  $region1: #{tpu_custom_call.1} parent=0
    #allocation2 [shape = 'u8[1024]{0}', space=smem, size = 0x400, scoped, tag = 'input window, operand 2, single buffered']
    #allocation3 [shape = 's32[2]{0}', space=sflag, size = 0x8, scoped, tag = 'scoped memory for tpu_custom_call.1']
    #allocation4 [shape = 's32[2]{0}', space=sflag, size = 0x8, scoped, tag = 'scoped memory for tpu_custom_call.1']
    #allocation5 [shape = 'u8[8192]{0}', space=vmem, size = 0x2000, scoped, tag = 'output window, operand 0']
    %8 = vsyncpa [#allocation4], 0
    %9 = vsyncpa [#allocation3], 0
    %s10 = scalar_lea.sflag [#allocation3], 1
    %11 = vsyncpa %s10, 0
    loop: start=0, step=1, limit=4
    $region2: #{tpu_custom_call.1} parent=1 // loop_pre_header
      _
    $region3: #{tpu_custom_call.1} parent=1 // loop_header
      %s13 = sphi 0, %s17
      %p14 = scmp.ge.s32.totalorder %s13, 4
      %s23 = sphi 0, %s25
      %s26 = sphi 0, %s23
      %s27 = sphi 0, %s26
      %s43 = sphi 0, %s27
      %s47 = sphi 0, %s47
      %s49 = sphi 0, %s47
      %s50 = sphi 0, %s49
      %s64 = sphi 0, %s50
      %s68 = sphi 0, %s68
      %s70 = sphi 0, %s68
      %s71 = sphi 0, %s70
      %s85 = sphi 0, %s71
      %s91 = sphi 0, %s93
      %s94 = sphi 0, %s91
      %s95 = sphi 0, %s94
      %s111 = sphi 0, %s95
    $region4: #{tpu_custom_call.1} parent=1 // loop_header_branch
      %16 = sbr.rel (%p14) target = $region8
    $region5: #{tpu_custom_call.1} parent=1 // loop_body
      %s18 = ssub.s32 %s13, 1
      %s19 = ssub.s32 %s13, 2
      %s20 = sadd.s32 %s13, 1
      %s21 = ssub.s32 %s13, %s20
      %p22 = scmp.eq.s32.totalorder %s21, 0
      %s24 = sadd.s32 %s23, 1
      %s25 = scalar_select %p22, %s23, %s24
      %p28 = pneg %p22
      %p29 = scmp.eq.s32.totalorder %s13, 1
      %p30 = por %p28, %p29
      %p31 = scmp.ne.s32.totalorder %s23, %s26
      %p32 = scmp.eq.s32.totalorder %s13, 0
      %p33 = por %p31, %p32
      %p34 = scmp.ne.s32.totalorder %s23, %s26
      %p35 = scmp.eq.s32.totalorder %s18, 1
      %p36 = por %p34, %p35
      %p37 = scmp.ne.s32.totalorder %s26, %s27
      %p38 = scmp.eq.s32.totalorder %s18, 0
      %p39 = por %p37, %p38
      %p40 = scmp.ne.s32.totalorder %s26, %s27
      %p41 = scmp.eq.s32.totalorder %s19, 1
      %p42 = por %p40, %p41
      %p44 = scmp.ne.s32.totalorder %s27, %s43
      %p45 = scmp.eq.s32.totalorder %s19, 0
      %p46 = por %p44, %p45
      %s48 = sadd.s32 %s47, 1
      %p51 = scmp.eq.s32.totalorder %s13, 1
      %p52 = scmp.ne.s32.totalorder %s47, %s49
      %p53 = scmp.eq.s32.totalorder %s13, 0
      %p54 = por %p52, %p53
      %p55 = scmp.ne.s32.totalorder %s47, %s49
      %p56 = scmp.eq.s32.totalorder %s18, 1
      %p57 = por %p55, %p56
      %p58 = scmp.ne.s32.totalorder %s49, %s50
      %p59 = scmp.eq.s32.totalorder %s18, 0
      %p60 = por %p58, %p59
      %p61 = scmp.ne.s32.totalorder %s49, %s50
      %p62 = scmp.eq.s32.totalorder %s19, 1
      %p63 = por %p61, %p62
      %p65 = scmp.ne.s32.totalorder %s50, %s64
      %p66 = scmp.eq.s32.totalorder %s19, 0
      %p67 = por %p65, %p66
      %s69 = sadd.s32 %s68, 1
      %p72 = scmp.eq.s32.totalorder %s13, 1
      %p73 = scmp.ne.s32.totalorder %s68, %s70
      %p74 = scmp.eq.s32.totalorder %s13, 0
      %p75 = por %p73, %p74
      %p76 = scmp.ne.s32.totalorder %s68, %s70
      %p77 = scmp.eq.s32.totalorder %s18, 1
      %p78 = por %p76, %p77
      %p79 = scmp.ne.s32.totalorder %s70, %s71
      %p80 = scmp.eq.s32.totalorder %s18, 0
      %p81 = por %p79, %p80
      %p82 = scmp.ne.s32.totalorder %s70, %s71
      %p83 = scmp.eq.s32.totalorder %s19, 1
      %p84 = por %p82, %p83
      %p86 = scmp.ne.s32.totalorder %s71, %s85
      %p87 = scmp.eq.s32.totalorder %s19, 0
      %p88 = por %p86, %p87
      %s89 = ssub.s32 %s13, %s20
      %p90 = scmp.eq.s32.totalorder %s89, 0
      %s92 = sadd.s32 %s91, 1
      %s93 = scalar_select %p90, %s91, %s92
      %p96 = pneg %p90
      %p97 = scmp.eq.s32.totalorder %s13, 1
      %p98 = por %p96, %p97
      %p99 = scmp.ne.s32.totalorder %s91, %s94
      %p100 = scmp.eq.s32.totalorder %s13, 0
      %p101 = por %p99, %p100
      %p102 = scmp.ne.s32.totalorder %s91, %s94
      %p103 = scmp.eq.s32.totalorder %s18, 1
      %p104 = por %p102, %p103
      %p105 = scmp.ne.s32.totalorder %s94, %s95
      %p106 = scmp.eq.s32.totalorder %s18, 0
      %p107 = por %p105, %p106
      %p108 = scmp.ne.s32.totalorder %s94, %s95
      %p109 = scmp.eq.s32.totalorder %s19, 1
      %p110 = por %p108, %p109
      %p112 = scmp.ne.s32.totalorder %s95, %s111
      %p113 = scmp.eq.s32.totalorder %s19, 0
      %p114 = por %p112, %p113
      %p115 = scmp.le.s32.totalorder 1, %s13
      %p116 = scmp.lt.s32.totalorder %s13, 3
      %p117 = pnand %p115, %p116
      %p118 = pneg %p117
      // Predicated region
      $region9: #{tpu_custom_call.1} parent=5 // pred_check
        _
      $region10: #{tpu_custom_call.1} parent=5 // pred_check_branch
        %120 = sbr.rel (%p117) target = $region12
      $region11: #{tpu_custom_call.1} parent=5 // pred_region
        %s121 = ssub.s32 %s13, 1
        // Predicated region
        $region13: #{tpu_custom_call.1} parent=11 // pred_check
          %p122 = pneg %p60
        $region14: #{tpu_custom_call.1} parent=11 // pred_check_branch
          %124 = sbr.rel (%p122) target = $region16
        $region15: #{tpu_custom_call.1} parent=11 // pred_region
          _
        $region16: #{tpu_custom_call.1} parent=11 // pred_fallthru
          _
        // Predicated region
        $region17: #{tpu_custom_call.1} parent=11 // pred_check
          %p125 = pneg %p81
        $region18: #{tpu_custom_call.1} parent=11 // pred_check_branch
          %127 = sbr.rel (%p125) target = $region20
        $region19: #{tpu_custom_call.1} parent=11 // pred_region
          %129 = vsyncadd [#allocation4], 0
          %s131 = sshll.u32 %s2, 4
          %s132 = int_to_ptr.vmem [resolvable:$true] %s131
          %134 = dma.vmem_to_smem %s132, 32, [#allocation2], [#allocation4]
        $region20: #{tpu_custom_call.1} parent=11 // pred_fallthru
          _
      $region12: #{tpu_custom_call.1} parent=5 // pred_fallthru
        _
      %p135 = scmp.lt.s32.totalorder %s13, 2
      // Predicated region
      $region21: #{tpu_custom_call.1} parent=5 // pred_check
        %p136 = pneg %p135
      $region22: #{tpu_custom_call.1} parent=5 // pred_check_branch
        %138 = sbr.rel (%p136) target = $region24
      $region23: #{tpu_custom_call.1} parent=5 // pred_region
        // Predicated region
        $region25: #{tpu_custom_call.1} parent=23 // pred_check
          %p139 = pneg %p33
        $region26: #{tpu_custom_call.1} parent=23 // pred_check_branch
          %141 = sbr.rel (%p139) target = $region28
        $region27: #{tpu_custom_call.1} parent=23 // pred_region
          %p142 = scmp.lt.s32.totalorder %s13, 1
          %s143 = scalar_select %p142, %s13, 1
          %s144 = smul.addr %s143, 10
          %s145 = smul.addr %s144, 4
          %s146 = scalar_lea.vmem %s0, %s145
        $region28: #{tpu_custom_call.1} parent=23 // pred_fallthru
          _
      $region24: #{tpu_custom_call.1} parent=5 // pred_fallthru
        _
      %p147 = scmp.le.s32.totalorder 1, %s13
      %p148 = scmp.lt.s32.totalorder %s13, 3
      %p149 = pnand %p147, %p148
      %p150 = pneg %p149
      // Predicated region
      $region29: #{tpu_custom_call.1} parent=5 // pred_check
        _
      $region30: #{tpu_custom_call.1} parent=5 // pred_check_branch
        %152 = sbr.rel (%p149) target = $region32
      $region31: #{tpu_custom_call.1} parent=5 // pred_region
        %s153 = ssub.s32 %s13, 1
        // Predicated region
        $region33: #{tpu_custom_call.1} parent=31 // pred_check
          %p154 = pneg %p81
        $region34: #{tpu_custom_call.1} parent=31 // pred_check_branch
          %156 = sbr.rel (%p154) target = $region36
        $region35: #{tpu_custom_call.1} parent=31 // pred_region
          %158 = dma.done [#allocation4], 32
        $region36: #{tpu_custom_call.1} parent=31 // pred_fallthru
          _
        %159 = sfence
        %p160 = scmp.lt.s32.totalorder %s18, 1
        %s161 = scalar_select %p160, %s18, 1
        %s162 = smul.addr %s161, 10
        %s163 = smul.addr %s162, 4
        %s164 = scalar_lea.vmem %s0, %s163
        %p165 = pneg %p39
        %p166 = pneg %p36
        %p167 = pneg %p60
        %p168 = pneg %p57
        %p169 = pneg %p81
        %p170 = pneg %p78
        %p171 = pneg %p107
        %p172 = pneg %p104
        %s173 = sand.u32 %s94, 1
        %s174 = scalar_lea.sflag [#allocation3], %s173
        %s175 = sand.u32 %s94, 1
        %s176 = smul.addr %s175, 8
        %s177 = scalar_lea.vmem [#allocation5], %s176
        %p178 = scmp.lt.s32.totalorder %s18, 1
        %s179 = scalar_select %p178, %s18, 1
        %s180 = smul.addr %s179, 10
        %s181 = smul.addr %s180, 4
        %s182 = scalar_lea.vmem %s0, %s181
        %v184 = vld [vmem:[%s182] sm:$0xff]
        %v185 = vld [vmem:[%s182 + $0x8] sm:$0xff]
        %v186 = vld [vmem:[%s182 + $0x10] sm:$0xff]
        %v187 = vld [vmem:[%s182 + $0x18] sm:$0xff]
        %v188 = vld [vmem:[%s182 + $0x20] sm:$0x33]
        %v189 = vld [vmem:[%s1] sm:$0x3]
        %v190 = vunpack.c.l.bf16 %v189
        %192 = vst [vmem:[#allocation1] ss:$4 sm:$0xff] %v189
        %v193 = vld.sshfl [vmem:[#allocation1] sm:$0xff pattern:$0x73625140]
        %195 = vrot.lane.b32.xlu0 %v193, 92
        %v196 = vpop.permute.xlu0 %195
        %v198 = vunpack.c.l.b16 %v186
        %v199 = vunpack.c.h.b16 %v186
        %v200 = vpack.c.b16 %v198, %v198
        %v201 = vpack.c.b16 %v199, %v199
        %vm202 = vcmask 31744
        %v204 = vsel %vm202, %v196, 0
        %vm206 = vcmask 1041408
        %v208 = vsel %vm206, %v200, 0
        %v211 = vsel %vm206, %v201, 0
        %213 = vmatpush.bf16.msra.mxu0 0
        %214 = vmatpush.bf16.msra.mxu0 0
        %215 = vmatpush.bf16.msra.mxu0 0
        %216 = vmatpush.bf16.msra.mxu0 0
        %217 = vmatpush.bf16.msra.mxu0 0
        %218 = vmatpush.bf16.msra.mxu0 0
        %219 = vmatpush.bf16.msra.mxu0 0
        %220 = vmatpush.bf16.msra.mxu0 %v208
        %221 = vmatmul.bf16.gmra.mxu0 %v204
        %v222 = vpop.f32.mrf.mxu0
        %v223 = vadd.f32 0.0, %v222
        %v224 = vpop.f32.mrf.mxu0
        %225 = vdwg.mxu0
        %226 = vmatpush.bf16.msra.mxu0 0
        %227 = vmatpush.bf16.msra.mxu0 0
        %228 = vmatpush.bf16.msra.mxu0 0
        %229 = vmatpush.bf16.msra.mxu0 0
        %230 = vmatpush.bf16.msra.mxu0 0
        %231 = vmatpush.bf16.msra.mxu0 0
        %232 = vmatpush.bf16.msra.mxu0 0
        %233 = vmatpush.bf16.msra.mxu0 %v211
        %234 = vmatmul.bf16.gmra.mxu0 %v204
        %v235 = vpop.f32.mrf.mxu0
        %v236 = vadd.f32 0.0, %v235
        %v237 = vpop.f32.mrf.mxu0
        %238 = vdwg.mxu0
        %v239 = vmax.f32 %v223, 0.0
        %v240 = vmax.f32 %v236, 0.0
        %v245 = vunpack.c.l.b16 %v184
        %v246 = vunpack.c.h.b16 %v184
        %v247 = vunpack.c.l.b16 %v185
        %v248 = vunpack.c.h.b16 %v185
        %v249 = vunpack.c.l.b16 %v187
        %v250 = vunpack.c.h.b16 %v187
        %v251 = vunpack.c.l.b16 %v188
        %v252 = vunpack.c.h.b16 %v188
        %v253 = vpack.c.b16 %v247, %v245
        %v254 = vpack.c.b16 %v248, %v246
        %v255 = vpack.c.b16 %v249, %v198
        %v256 = vpack.c.b16 %v250, %v199
        %v257 = vpack.c.b16 %v251, %v251
        %v258 = vpack.c.b16 %v252, %v252
        %vm263 = vcmask 293888
        %v264 = vsel %vm263, %v189, 0
        %v267 = vsel %vm206, %v257, 0
        %v270 = vsel %vm206, %v258, 0
        %272 = vmatpush.bf16.msra.mxu0 0
        %273 = vmatpush.bf16.msra.mxu0 0
        %274 = vmatpush.bf16.msra.mxu0 0
        %275 = vmatpush.bf16.msra.mxu0 0
        %276 = vmatpush.bf16.msra.mxu0 0
        %277 = vmatpush.bf16.msra.mxu0 %v267
        %278 = vmatpush.bf16.msra.mxu0 %v255
        %279 = vmatpush.bf16.msra.mxu0 %v253
        %280 = vmatmul.bf16.gmra.mxu0 %v264
        %v281 = vpop.f32.mrf.mxu0
        %v282 = vadd.f32 0.0, %v281
        %v283 = vpop.f32.mrf.mxu0
        %284 = vdwg.mxu0
        %285 = vmatpush.bf16.msra.mxu0 0
        %286 = vmatpush.bf16.msra.mxu0 0
        %287 = vmatpush.bf16.msra.mxu0 0
        %288 = vmatpush.bf16.msra.mxu0 0
        %289 = vmatpush.bf16.msra.mxu0 0
        %290 = vmatpush.bf16.msra.mxu0 %v270
        %291 = vmatpush.bf16.msra.mxu0 %v256
        %292 = vmatpush.bf16.msra.mxu0 %v254
        %293 = vmatmul.bf16.gmra.mxu0 %v264
        %v294 = vpop.f32.mrf.mxu0
        %v295 = vadd.f32 0.0, %v294
        %v296 = vpop.f32.mrf.mxu0
        %297 = vdwg.mxu0
        %v298 = vmax.f32 %v282, 0.0
        %v299 = vmax.f32 %v295, 0.0
        %v300 = vunpack.c.l.bf16 %v186
        %v301 = vunpack.c.h.bf16 %v186
        %vm302 = vcmask 1043456
        %v303 = vsel %vm302, %v300, 0.0
        %v304 = vsel %vm302, %v301, 0.0
        %v305 = vadd.f32 %v303, %v304
        %306 = vadd.xlane.f32.xlu0 %v305
        %v307 = vpop.xlane.xlu0 %306
        %v308 = vrcp.pop 256.0
        %v309 = vmul.f32 256.0, %v308
        %v310 = vsub.f32 1.0, %v309
        %v311 = vmul.f32 %v308, %v310
        %v312 = vadd.f32 %v308, %v311
        %vm313 = vweird.f32 %v308
        %v314 = vsel %vm313, %v308, %v312
        %v315 = vmul.f32 %v307, %v314
        %317 = vst [vmem:[#allocation1] ss:$2 sm:$0xff] %v190
        %v318 = vld.sshfl [vmem:[#allocation1] sm:$0xff pattern:$0x75316420]
        %319 = vrot.lane.b32.xlu0 %v318, 88
        %v320 = vpop.permute.xlu0 %319
        %v321 = vsel %vm202, %v320, 0
        %v324 = vsel %vm302, %v315, 0
        %326 = vmatpush.msra.mxu0 0.0
        %327 = vmatpush.msra.mxu0 0.0
        %328 = vmatpush.msra.mxu0 0.0
        %329 = vmatpush.msra.mxu0 0.0
        %330 = vmatpush.msra.mxu0 0.0
        %331 = vmatpush.msra.mxu0 0.0
        %332 = vmatpush.msra.mxu0 0.0
        %333 = vmatpush.msra.mxu0 0.0
        %334 = vmatpush.msra.mxu0 0.0
        %335 = vmatpush.msra.mxu0 0.0
        %336 = vmatpush.msra.mxu0 0.0
        %337 = vmatpush.msra.mxu0 0.0
        %338 = vmatpush.msra.mxu0 0.0
        %339 = vmatpush.msra.mxu0 0.0
        %340 = vmatpush.msra.mxu0 0.0
        %341 = vmatpush.msra.mxu0 %v324
        %342 = vmatmul.f32.gmra.mxu0 %v321
        %v343 = vpop.f32.mrf.mxu0
        %v344 = vadd.f32 0.0, %v343
        %345 = vdwg.mxu0
        %v346 = vmax.f32 %v344, 0.0
        %v349 = vrot.slane %v298, 4
        %v350 = vrot.slane %v299, 4
        %v353 = vsel %vm302, %v239, %v349
        %v354 = vsel %vm302, %v240, %v350
        %v355 = vpack.c.bf16 %v353, %v353
        %v356 = vpack.c.bf16 %v354, %v354
        %357 = vst [vmem:[#allocation1] ss:$2 sm:$0xff] %v190
        %v358 = vld.sshfl [vmem:[#allocation1] sm:$0xff pattern:$0x75316420]
        %359 = vrot.lane.b32.xlu0 %v358, 76
        %v360 = vpop.permute.xlu0 %359
        %v361 = vsel %vm202, %v360, 0
        %v364 = vsel %vm302, %v346, 0
        %366 = vmatpush.msra.mxu0 0.0
        %367 = vmatpush.msra.mxu0 0.0
        %368 = vmatpush.msra.mxu0 0.0
        %369 = vmatpush.msra.mxu0 0.0
        %370 = vmatpush.msra.mxu0 0.0
        %371 = vmatpush.msra.mxu0 0.0
        %372 = vmatpush.msra.mxu0 0.0
        %373 = vmatpush.msra.mxu0 0.0
        %374 = vmatpush.msra.mxu0 0.0
        %375 = vmatpush.msra.mxu0 0.0
        %376 = vmatpush.msra.mxu0 0.0
        %377 = vmatpush.msra.mxu0 0.0
        %378 = vmatpush.msra.mxu0 0.0
        %379 = vmatpush.msra.mxu0 0.0
        %380 = vmatpush.msra.mxu0 0.0
        %381 = vmatpush.msra.mxu0 %v364
        %382 = vmatmul.f32.gmra.mxu0 %v361
        %v383 = vpop.f32.mrf.mxu0
        %v384 = vadd.f32 0.0, %v383
        %385 = vdwg.mxu0
        %387 = vset.pattern.permute.xlu0 0
        %388 = vperm.xlu0 %387, %v384
        %v389 = vpop.permute.xlu0 %388
        %391 = vst [vmem:[#allocation1] ss:$4 sm:$0xff] %v189
        %v392 = vld.sshfl [vmem:[#allocation1] sm:$0xff pattern:$0x73625140]
        %394 = vrot.lane.b32.xlu0 %v392, 84
        %v395 = vpop.permute.xlu0 %394
        %vm396 = vcmask 64512
        %v398 = vsel %vm396, %v395, 0
        %v401 = vsel %vm302, %v355, 0
        %v404 = vsel %vm302, %v356, 0
        %406 = vmatpush.bf16.msra.mxu0 0
        %407 = vmatpush.bf16.msra.mxu0 0
        %408 = vmatpush.bf16.msra.mxu0 0
        %409 = vmatpush.bf16.msra.mxu0 0
        %410 = vmatpush.bf16.msra.mxu0 0
        %411 = vmatpush.bf16.msra.mxu0 0
        %412 = vmatpush.bf16.msra.mxu0 0
        %413 = vmatpush.bf16.msra.mxu0 %v401
        %414 = vmatmul.bf16.gmra.mxu0 %v398
        %v415 = vpop.f32.mrf.mxu0
        %v416 = vadd.f32 %v389, %v415
        %v417 = vpop.f32.mrf.mxu0
        %418 = vdwg.mxu0
        %419 = vmatpush.bf16.msra.mxu0 0
        %420 = vmatpush.bf16.msra.mxu0 0
        %421 = vmatpush.bf16.msra.mxu0 0
        %422 = vmatpush.bf16.msra.mxu0 0
        %423 = vmatpush.bf16.msra.mxu0 0
        %424 = vmatpush.bf16.msra.mxu0 0
        %425 = vmatpush.bf16.msra.mxu0 0
        %426 = vmatpush.bf16.msra.mxu0 %v404
        %427 = vmatmul.bf16.gmra.mxu0 %v398
        %v428 = vpop.f32.mrf.mxu0
        %v429 = vadd.f32 %v389, %v428
        %v430 = vpop.f32.mrf.mxu0
        %431 = vdwg.mxu0
        %v432 = vpack.c.bf16 %v416, %v416
        %v433 = vpack.c.bf16 %v429, %v429
        %434 = vst [vmem:[#allocation1] ss:$4 sm:$0xff] %v189
        %v435 = vld.sshfl [vmem:[#allocation1] sm:$0xff pattern:$0x73625140]
        %437 = vrot.lane.b32.xlu0 %v435, 72
        %v438 = vpop.permute.xlu0 %437
        %v440 = vsel %vm202, %v438, 0
        %v443 = vsel %vm206, %v432, 0
        %v446 = vsel %vm206, %v433, 0
        %448 = vmatpush.bf16.msra.mxu0 0
        %449 = vmatpush.bf16.msra.mxu0 0
        %450 = vmatpush.bf16.msra.mxu0 0
        %451 = vmatpush.bf16.msra.mxu0 0
        %452 = vmatpush.bf16.msra.mxu0 0
        %453 = vmatpush.bf16.msra.mxu0 0
        %454 = vmatpush.bf16.msra.mxu0 0
        %455 = vmatpush.bf16.msra.mxu0 %v443
        %456 = vmatmul.bf16.gmra.mxu0 %v440
        %v457 = vpop.f32.mrf.mxu0
        %v458 = vadd.f32 0.0, %v457
        %v459 = vpop.f32.mrf.mxu0
        %460 = vdwg.mxu0
        %461 = vmatpush.bf16.msra.mxu0 0
        %462 = vmatpush.bf16.msra.mxu0 0
        %463 = vmatpush.bf16.msra.mxu0 0
        %464 = vmatpush.bf16.msra.mxu0 0
        %465 = vmatpush.bf16.msra.mxu0 0
        %466 = vmatpush.bf16.msra.mxu0 0
        %467 = vmatpush.bf16.msra.mxu0 0
        %468 = vmatpush.bf16.msra.mxu0 %v446
        %469 = vmatmul.bf16.gmra.mxu0 %v440
        %v470 = vpop.f32.mrf.mxu0
        %v471 = vadd.f32 0.0, %v470
        %v472 = vpop.f32.mrf.mxu0
        %473 = vdwg.mxu0
        %v474 = vxor.u32 %v458, 2147483648
        %v475 = vxor.u32 %v471, 2147483648
        %v476 = vmul.f32 %v474, 1.442695
        %v477 = vpow.pop %v476
        %v478 = vmul.f32 %v475, 1.442695
        %v479 = vpow.pop %v478
        %v480 = vadd.f32 %v477, 1.0
        %v481 = vadd.f32 %v479, 1.0
        %v482 = vrcp.pop %v480
        %v483 = vmul.f32 %v480, %v482
        %v484 = vsub.f32 1.0, %v483
        %v485 = vmul.f32 %v482, %v484
        %v486 = vadd.f32 %v482, %v485
        %vm487 = vweird.f32 %v480
        %vm488 = vweird.f32 %v482
        %vm489 = vmor %vm487, %vm488
        %v490 = vsel %vm489, %v482, %v486
        %v491 = vand.u32 2147483647, %v480
        %vm492 = vcmp.eq.f32.partialorder %v491, 8.507059e+37
        %v493 = vand.u32 %v480, 2147483648
        %v494 = vor.u32 1.1754944e-38, %v493
        %v495 = vsel %vm492, %v494, %v490
        %v496 = vmul.f32 1.0, %v495
        %v497 = vrcp.pop %v481
        %v498 = vmul.f32 %v481, %v497
        %v499 = vsub.f32 1.0, %v498
        %v500 = vmul.f32 %v497, %v499
        %v501 = vadd.f32 %v497, %v500
        %vm502 = vweird.f32 %v481
        %vm503 = vweird.f32 %v497
        %vm504 = vmor %vm502, %vm503
        %v505 = vsel %vm504, %v497, %v501
        %v506 = vand.u32 2147483647, %v481
        %vm507 = vcmp.eq.f32.partialorder %v506, 8.507059e+37
        %v508 = vand.u32 %v481, 2147483648
        %v509 = vor.u32 1.1754944e-38, %v508
        %v510 = vsel %vm507, %v509, %v505
        %v511 = vmul.f32 1.0, %v510
        %v512 = vmul.f32 %v496, %v416
        %v513 = vmul.f32 %v511, %v429
        %v514 = vsel %vm206, %v416, 0.0
        %v515 = vsel %vm206, %v429, 0.0
        %v516 = vadd.f32 %v514, %v515
        %517 = vadd.xlane.f32.xlu0 %v516
        %v518 = vpop.xlane.xlu0 %517
        %v519 = vmul.f32 %v518, %v314
        %v520 = vmul.f32 %v416, %v519
        %v521 = vmul.f32 %v429, %v519
        %v522 = vsel %vm206, %v520, 0.0
        %v523 = vrot.slane %v522, 4
        %v524 = vadd.f32 %v522, %v523
        %v525 = vrot.slane %v524, 2
        %v526 = vadd.f32 %v524, %v525
        %v527 = vrot.slane %v526, 1
        %v528 = vadd.f32 %v526, %v527
        %v529 = vsel %vm206, %v521, 0.0
        %v530 = vrot.slane %v529, 4
        %v531 = vadd.f32 %v529, %v530
        %v532 = vrot.slane %v531, 2
        %v533 = vadd.f32 %v531, %v532
        %v534 = vrot.slane %v533, 1
        %v535 = vadd.f32 %v533, %v534
        %vm536 = vcmask 1040384
        %v537 = vsel %vm536, %v528, 0.0
        %v538 = vsel %vm536, %v535, 0.0
        %v539 = vadd.f32 %v537, %v538
        %540 = vadd.xlane.f32.xlu0 %v539
        %v541 = vpop.xlane.xlu0 %540
        %v542 = vrot.slane %v541, 4
        %v543 = vadd.f32 %v541, %v542
        %v544 = vrot.slane %v543, 2
        %v545 = vadd.f32 %v543, %v544
        %v546 = vrot.slane %v545, 1
        %v547 = vadd.f32 %v545, %v546
        %s548 = vtos %v547
        %v549 = vrcp.pop 256.0
        %v550 = vmul.f32 256.0, %v549
        %v551 = vsub.f32 1.0, %v550
        %v552 = vmul.f32 %v549, %v551
        %v553 = vadd.f32 %v549, %v552
        %vm554 = vweird.f32 %v549
        %v555 = vsel %vm554, %v549, %v553
        %s556 = vtos %v555
        %s557 = smul.f32 %s548, %s556
        %v558 = vstv %s557
        %v559 = vsub.f32 %v528, %v558
        %v560 = vsub.f32 %v535, %v558
        %v561 = vmul.f32 %v559, %v559
        %v562 = vmul.f32 %v560, %v560
        %v563 = vsel %vm536, %v561, 0.0
        %v564 = vsel %vm536, %v562, 0.0
        %v565 = vadd.f32 %v563, %v564
        %566 = vadd.xlane.f32.xlu0 %v565
        %v567 = vpop.xlane.xlu0 %566
        %v568 = vrot.slane %v567, 4
        %v569 = vadd.f32 %v567, %v568
        %v570 = vrot.slane %v569, 2
        %v571 = vadd.f32 %v569, %v570
        %v572 = vrot.slane %v571, 1
        %v573 = vadd.f32 %v571, %v572
        %s574 = vtos %v573
        %v575 = vrcp.pop 255.0
        %v576 = vmul.f32 255.0, %v575
        %v577 = vsub.f32 1.0, %v576
        %v578 = vmul.f32 %v575, %v577
        %v579 = vadd.f32 %v575, %v578
        %vm580 = vweird.f32 %v575
        %v581 = vsel %vm580, %v575, %v579
        %s582 = vtos %v581
        %s583 = smul.f32 %s574, %s582
        %v584 = vstv %s583
        %v585 = vrsqrt.pop %v584
        %v586 = vmul.f32 %v585, %v584
        %v587 = vmul.f32 %v586, %v585
        %v588 = vmul.f32 0.5, %v587
        %v589 = vsub.f32 1.5, %v588
        %v590 = vmul.f32 %v585, %v589
        %v591 = vmul.f32 %v584, %v590
        %vm592 = vcmp.eq.f32.partialorder %v584, inf
        %v593 = vsel %vm592, %v584, %v591
        %vm594 = vcmp.eq.f32.partialorder %v584, 0.0
        %v595 = vand.u32 %v584, 2147483648
        %v596 = vsel %vm594, %v595, %v593
        %s597 = vtos %v596
        %s598 = sadd.f32 %s597, 1e-05
        %v599 = vstv %s598
        %v600 = vrcp.pop %v599
        %v601 = vmul.f32 %v599, %v600
        %v602 = vsub.f32 1.0, %v601
        %v603 = vmul.f32 %v600, %v602
        %v604 = vadd.f32 %v600, %v603
        %vm605 = vweird.f32 %v599
        %vm606 = vweird.f32 %v600
        %vm607 = vmor %vm605, %vm606
        %v608 = vsel %vm607, %v600, %v604
        %v609 = vand.u32 2147483647, %v599
        %vm610 = vcmp.eq.f32.partialorder %v609, 8.507059e+37
        %v611 = vand.u32 %v599, 2147483648
        %v612 = vor.u32 1.1754944e-38, %v611
        %v613 = vsel %vm610, %v612, %v608
        %v614 = vmul.f32 %v559, %v613
        %v615 = vmul.f32 %v560, %v613
        %s616 = sld [smem:[#allocation2]]
        %v617 = vstv %s616
        %v618 = vmul.f32 %v614, %v617
        %v619 = vmul.f32 %v615, %v617
        %s620 = sld [smem:[#allocation2 + $0x80]]
        %v621 = vstv %s620
        %v622 = vadd.f32 %v618, %v621
        %v623 = vadd.f32 %v619, %v621
        %v624 = vxor.u32 %v622, 2147483648
        %v625 = vxor.u32 %v623, 2147483648
        %v626 = vmul.f32 %v624, 1.442695
        %v627 = vpow.pop %v626
        %v628 = vmul.f32 %v625, 1.442695
        %v629 = vpow.pop %v628
        %v630 = vadd.f32 %v627, 1.0
        %v631 = vadd.f32 %v629, 1.0
        %v632 = vrcp.pop %v630
        %v633 = vmul.f32 %v630, %v632
        %v634 = vsub.f32 1.0, %v633
        %v635 = vmul.f32 %v632, %v634
        %v636 = vadd.f32 %v632, %v635
        %vm637 = vweird.f32 %v630
        %vm638 = vweird.f32 %v632
        %vm639 = vmor %vm637, %vm638
        %v640 = vsel %vm639, %v632, %v636
        %v641 = vand.u32 2147483647, %v630
        %vm642 = vcmp.eq.f32.partialorder %v641, 8.507059e+37
        %v643 = vand.u32 %v630, 2147483648
        %v644 = vor.u32 1.1754944e-38, %v643
        %v645 = vsel %vm642, %v644, %v640
        %v646 = vmul.f32 1.0, %v645
        %v647 = vrcp.pop %v631
        %v648 = vmul.f32 %v631, %v647
        %v649 = vsub.f32 1.0, %v648
        %v650 = vmul.f32 %v647, %v649
        %v651 = vadd.f32 %v647, %v650
        %vm652 = vweird.f32 %v631
        %vm653 = vweird.f32 %v647
        %vm654 = vmor %vm652, %vm653
        %v655 = vsel %vm654, %v647, %v651
        %v656 = vand.u32 2147483647, %v631
        %vm657 = vcmp.eq.f32.partialorder %v656, 8.507059e+37
        %v658 = vand.u32 %v631, 2147483648
        %v659 = vor.u32 1.1754944e-38, %v658
        %v660 = vsel %vm657, %v659, %v655
        %v661 = vmul.f32 1.0, %v660
        %v662 = vmul.f32 %v416, %v646
        %v663 = vmul.f32 %v429, %v661
        %vm664 = vcmask 1043458
        %v665 = vsel %vm664, %v416, 0.0
        %v666 = vsel %vm664, %v429, 0.0
        %v667 = vadd.f32 %v665, %v666
        %668 = vadd.xlane.f32.xlu0 %v667
        %v669 = vpop.xlane.xlu0 %668
        %v670 = vmul.f32 %v669, %v314
        %v671 = vmul.f32 %v416, %v670
        %v672 = vmul.f32 %v429, %v670
        %v675 = vrot.slane %v671, 2
        %v676 = vrot.slane %v672, 2
        %v679 = vsel %vm206, %v675, 0.0
        %v680 = vrot.slane %v679, 4
        %v681 = vadd.f32 %v679, %v680
        %v682 = vrot.slane %v681, 2
        %v683 = vadd.f32 %v681, %v682
        %v684 = vrot.slane %v683, 1
        %v685 = vadd.f32 %v683, %v684
        %v686 = vsel %vm206, %v676, 0.0
        %v687 = vrot.slane %v686, 4
        %v688 = vadd.f32 %v686, %v687
        %v689 = vrot.slane %v688, 2
        %v690 = vadd.f32 %v688, %v689
        %v691 = vrot.slane %v690, 1
        %v692 = vadd.f32 %v690, %v691
        %v693 = vsel %vm536, %v685, 0.0
        %v694 = vsel %vm536, %v692, 0.0
        %v695 = vadd.f32 %v693, %v694
        %696 = vadd.xlane.f32.xlu0 %v695
        %v697 = vpop.xlane.xlu0 %696
        %v698 = vrot.slane %v697, 4
        %v699 = vadd.f32 %v697, %v698
        %v700 = vrot.slane %v699, 2
        %v701 = vadd.f32 %v699, %v700
        %v702 = vrot.slane %v701, 1
        %v703 = vadd.f32 %v701, %v702
        %s704 = vtos %v703
        %v705 = vrcp.pop 256.0
        %v706 = vmul.f32 256.0, %v705
        %v707 = vsub.f32 1.0, %v706
        %v708 = vmul.f32 %v705, %v707
        %v709 = vadd.f32 %v705, %v708
        %vm710 = vweird.f32 %v705
        %v711 = vsel %vm710, %v705, %v709
        %s712 = vtos %v711
        %s713 = smul.f32 %s704, %s712
        %v714 = vstv %s713
        %v715 = vsub.f32 %v685, %v714
        %v716 = vsub.f32 %v692, %v714
        %v717 = vmul.f32 %v715, %v715
        %v718 = vmul.f32 %v716, %v716
        %v719 = vsel %vm536, %v717, 0.0
        %v720 = vsel %vm536, %v718, 0.0
        %v721 = vadd.f32 %v719, %v720
        %722 = vadd.xlane.f32.xlu0 %v721
        %v723 = vpop.xlane.xlu0 %722
        %v724 = vrot.slane %v723, 4
        %v725 = vadd.f32 %v723, %v724
        %v726 = vrot.slane %v725, 2
        %v727 = vadd.f32 %v725, %v726
        %v728 = vrot.slane %v727, 1
        %v729 = vadd.f32 %v727, %v728
        %s730 = vtos %v729
        %v731 = vrcp.pop 255.0
        %v732 = vmul.f32 255.0, %v731
        %v733 = vsub.f32 1.0, %v732
        %v734 = vmul.f32 %v731, %v733
        %v735 = vadd.f32 %v731, %v734
        %vm736 = vweird.f32 %v731
        %v737 = vsel %vm736, %v731, %v735
        %s738 = vtos %v737
        %s739 = smul.f32 %s730, %s738
        %v740 = vstv %s739
        %v741 = vrsqrt.pop %v740
        %v742 = vmul.f32 %v741, %v740
        %v743 = vmul.f32 %v742, %v741
        %v744 = vmul.f32 0.5, %v743
        %v745 = vsub.f32 1.5, %v744
        %v746 = vmul.f32 %v741, %v745
        %v747 = vmul.f32 %v740, %v746
        %vm748 = vcmp.eq.f32.partialorder %v740, inf
        %v749 = vsel %vm748, %v740, %v747
        %vm750 = vcmp.eq.f32.partialorder %v740, 0.0
        %v751 = vand.u32 %v740, 2147483648
        %v752 = vsel %vm750, %v751, %v749
        %s753 = vtos %v752
        %s754 = sadd.f32 %s753, 1e-05
        %v755 = vstv %s754
        %v756 = vrcp.pop %v755
        %v757 = vmul.f32 %v755, %v756
        %v758 = vsub.f32 1.0, %v757
        %v759 = vmul.f32 %v756, %v758
        %v760 = vadd.f32 %v756, %v759
        %vm761 = vweird.f32 %v755
        %vm762 = vweird.f32 %v756
        %vm763 = vmor %vm761, %vm762
        %v764 = vsel %vm763, %v756, %v760
        %v765 = vand.u32 2147483647, %v755
        %vm766 = vcmp.eq.f32.partialorder %v765, 8.507059e+37
        %v767 = vand.u32 %v755, 2147483648
        %v768 = vor.u32 1.1754944e-38, %v767
        %v769 = vsel %vm766, %v768, %v764
        %v770 = vmul.f32 %v715, %v769
        %v771 = vmul.f32 %v716, %v769
        %s772 = sld [smem:[#allocation2 + $0x1]]
        %v773 = vstv %s772
        %v774 = vmul.f32 %v770, %v773
        %v775 = vmul.f32 %v771, %v773
        %s776 = sld [smem:[#allocation2 + $0x81]]
        %v777 = vstv %s776
        %v778 = vadd.f32 %v774, %v777
        %v779 = vadd.f32 %v775, %v777
        %v780 = vxor.u32 %v778, 2147483648
        %v781 = vxor.u32 %v779, 2147483648
        %v782 = vmul.f32 %v780, 1.442695
        %v783 = vpow.pop %v782
        %v784 = vmul.f32 %v781, 1.442695
        %v785 = vpow.pop %v784
        %v786 = vadd.f32 %v783, 1.0
        %v787 = vadd.f32 %v785, 1.0
        %v788 = vrcp.pop %v786
        %v789 = vmul.f32 %v786, %v788
        %v790 = vsub.f32 1.0, %v789
        %v791 = vmul.f32 %v788, %v790
        %v792 = vadd.f32 %v788, %v791
        %vm793 = vweird.f32 %v786
        %vm794 = vweird.f32 %v788
        %vm795 = vmor %vm793, %vm794
        %v796 = vsel %vm795, %v788, %v792
        %v797 = vand.u32 2147483647, %v786
        %vm798 = vcmp.eq.f32.partialorder %v797, 8.507059e+37
        %v799 = vand.u32 %v786, 2147483648
        %v800 = vor.u32 1.1754944e-38, %v799
        %v801 = vsel %vm798, %v800, %v796
        %v802 = vmul.f32 1.0, %v801
        %v803 = vrcp.pop %v787
        %v804 = vmul.f32 %v787, %v803
        %v805 = vsub.f32 1.0, %v804
        %v806 = vmul.f32 %v803, %v805
        %v807 = vadd.f32 %v803, %v806
        %vm808 = vweird.f32 %v787
        %vm809 = vweird.f32 %v803
        %vm810 = vmor %vm808, %vm809
        %v811 = vsel %vm810, %v803, %v807
        %v812 = vand.u32 2147483647, %v787
        %vm813 = vcmp.eq.f32.partialorder %v812, 8.507059e+37
        %v814 = vand.u32 %v787, 2147483648
        %v815 = vor.u32 1.1754944e-38, %v814
        %v816 = vsel %vm813, %v815, %v811
        %v817 = vmul.f32 1.0, %v816
        %v818 = vmul.f32 %v416, %v802
        %v819 = vmul.f32 %v429, %v817
        %v820 = vsel %vm206, %v662, %v818
        %v821 = vsel %vm206, %v663, %v819
        %v824 = vrot.slane %v820, 4
        %v825 = vrot.slane %v821, 4
        %v828 = vsel %vm302, %v512, %v824
        %v829 = vsel %vm302, %v513, %v825
        %v830 = vpack.c.bf16 %v828, %v828
        %v831 = vpack.c.bf16 %v829, %v829
        %832 = vst [vmem:[#allocation1] ss:$4 sm:$0xff] %v189
        %v833 = vld.sshfl [vmem:[#allocation1] sm:$0xff pattern:$0x73625140]
        %835 = vrot.lane.b32.xlu0 %v833, 68
        %v836 = vpop.permute.xlu0 %835
        %v838 = vsel %vm396, %v836, 0
        %v841 = vsel %vm302, %v830, 0
        %v844 = vsel %vm302, %v831, 0
        %846 = vmatpush.bf16.msra.mxu0 0
        %847 = vmatpush.bf16.msra.mxu0 0
        %848 = vmatpush.bf16.msra.mxu0 0
        %849 = vmatpush.bf16.msra.mxu0 0
        %850 = vmatpush.bf16.msra.mxu0 0
        %851 = vmatpush.bf16.msra.mxu0 0
        %852 = vmatpush.bf16.msra.mxu0 0
        %853 = vmatpush.bf16.msra.mxu0 %v841
        %854 = vmatmul.bf16.gmra.mxu0 %v838
        %v855 = vpop.f32.mrf.mxu0
        %v856 = vadd.f32 0.0, %v855
        %v857 = vpop.f32.mrf.mxu0
        %858 = vdwg.mxu0
        %859 = vmatpush.bf16.msra.mxu0 0
        %860 = vmatpush.bf16.msra.mxu0 0
        %861 = vmatpush.bf16.msra.mxu0 0
        %862 = vmatpush.bf16.msra.mxu0 0
        %863 = vmatpush.bf16.msra.mxu0 0
        %864 = vmatpush.bf16.msra.mxu0 0
        %865 = vmatpush.bf16.msra.mxu0 0
        %866 = vmatpush.bf16.msra.mxu0 %v844
        %867 = vmatmul.bf16.gmra.mxu0 %v838
        %v868 = vpop.f32.mrf.mxu0
        %v869 = vadd.f32 0.0, %v868
        %v870 = vpop.f32.mrf.mxu0
        %871 = vdwg.mxu0
        %v874 = vrot.slane %v869, 4
        %v875 = vsel %vm302, %v856, %v874
        %877 = vst [vmem:[%s177] sm:$0xff] %v875
        %s878 = sand.u32 %s94, 1
        %s879 = scalar_lea.sflag [#allocation3], %s878
        %s880 = sand.u32 %s94, 1
        %s881 = smul.addr %s880, 8
        %s882 = scalar_lea.vmem [#allocation5], %s881
        // Predicated region
        $region37: #{tpu_custom_call.1} parent=31 // pred_check
          %p883 = pneg %p104
        $region38: #{tpu_custom_call.1} parent=31 // pred_check_branch
          %885 = sbr.rel (%p883) target = $region40
        $region39: #{tpu_custom_call.1} parent=31 // pred_region
          %887 = vsyncadd %s879, 0
          %s888 = smul.addr %s18, 2
          %s889 = smul.addr %s888, 4
          %s890 = scalar_lea.hbm %s3, %s889
          %s892 = sshll.u32 %s882, 4
          %s893 = int_to_ptr.vmem [resolvable:$true] %s892
          %s894 = sshll.u32 %s890, 4
          %s895 = int_to_ptr.hbm [resolvable:$true] %s894
          %897 = dma.vmem_to_hbm [thread:$0]  %s893, 128, %s895, %s879
        $region40: #{tpu_custom_call.1} parent=31 // pred_fallthru
          _
      $region32: #{tpu_custom_call.1} parent=5 // pred_fallthru
        _
      %p898 = scmp.le.s32.totalorder 2, %s13
      // Predicated region
      $region41: #{tpu_custom_call.1} parent=5 // pred_check
        %p899 = pneg %p898
      $region42: #{tpu_custom_call.1} parent=5 // pred_check_branch
        %901 = sbr.rel (%p899) target = $region44
      $region43: #{tpu_custom_call.1} parent=5 // pred_region
        %s902 = ssub.s32 %s13, 2
        // Predicated region
        $region45: #{tpu_custom_call.1} parent=43 // pred_check
          %p903 = pneg %p110
        $region46: #{tpu_custom_call.1} parent=43 // pred_check_branch
          %905 = sbr.rel (%p903) target = $region48
        $region47: #{tpu_custom_call.1} parent=43 // pred_region
          %s906 = sand.u32 %s95, 1
          %s907 = scalar_lea.sflag [#allocation3], %s906
          %s908 = sand.u32 %s95, 1
          %s909 = smul.addr %s908, 8
          %s910 = scalar_lea.vmem [#allocation5], %s909
          %912 = dma.done %s907, 128
        $region48: #{tpu_custom_call.1} parent=43 // pred_fallthru
          _
      $region44: #{tpu_custom_call.1} parent=5 // pred_fallthru
        _
    $region6: #{tpu_custom_call.1} parent=1 // loop_footer
      %s17 = sadd.s32 1, %s13
    $region7: #{tpu_custom_call.1} parent=1 // loop_footer_branch
      %12 = sbr.rel target = $region3
    $region8: #{tpu_custom_call.1} parent=1 // loop_exit
      _
    %913 = vsyncpa [#allocation3], 1
    %s914 = scalar_lea.sflag [#allocation3], 1
    %915 = vsyncpa %s914, 1
    %916 = vsyncpa [#allocation4], 1
    %s917 = scalar_lea.sflag [#allocation4], 1
    %918 = vsyncpa %s917, 1

</llo_original>
